<compile_context>
chip_gen: v7x
topology: tpu7x:2x2x1
jax: 0.10.0
libtpu: 0.0.40
codegen_flags: <defaults>
</compile_context>

<pallas_src>
import jax
import jax.numpy as jnp
from jax.experimental import pallas as pl
from jax.experimental.pallas import tpu as pltpu

D_IN = 512
D_OUT = 8


def _fc2_kernel(x_ref, wt_ref, b_ref, o_ref):
    # x_ref: (TILE_B, 512), wt_ref: (512, 8), b_ref: (8, 1), o_ref: (8, TILE_B)
    acc = jnp.dot(x_ref[...], wt_ref[...],
                  preferred_element_type=jnp.float32)          # MXU: (TILE_B, 8)
    # Transpose the small result tile (XLU slot, ~free) so bias-add and store
    # are lane-dense full-width ops instead of 8/128-lane masked ops.
    o_ref[...] = (acc.T + b_ref[...]).astype(o_ref.dtype)      # (8, TILE_B)


def _pick_tile_b(batch, requested):
    """Choose a layout-legal batch tile.

    Small batches: one full-extent tile (legal for any size / dtype).
    Larger batches: multiple of 128 (lane-dense output's last dim + sublane
    rule for any input dtype) and at least 2 grid steps so both v7x
    TensorCores get work.
    """
    if batch <= 256:
        return batch
    t = min(requested, batch)
    t = max(128, (t // 128) * 128)
    half = -(-batch // 2)                  # cdiv(B, 2)
    half_rounded = -(-half // 128) * 128   # round up to 128
    return min(t, half_rounded)


def mlp_module_forward(x, w_fc2, b_fc2, *, tile_b=2048):
    """x: (B, 512); w_fc2: (8, 512) (PyTorch layout); b_fc2: (8,). Returns (B, 8)."""
    B, d_in = x.shape
    d_out = w_fc2.shape[0]

    w_t = w_fc2.T.astype(x.dtype)          # (512, 8): one-time transpose in the wrapper
    b2d = b_fc2.reshape(d_out, 1)          # broadcasts over lanes inside the kernel

    tb = _pick_tile_b(B, tile_b)
    grid = (pl.cdiv(B, tb),)

    out_t = pl.pallas_call(
        _fc2_kernel,
        out_shape=jax.ShapeDtypeStruct((d_out, B), x.dtype),   # lane-dense (8, B)
        grid=grid,
        in_specs=[
            pl.BlockSpec((tb, d_in), lambda i: (i, 0)),        # x tile (pipelined DMA)
            pl.BlockSpec((d_in, d_out), lambda i: (0, 0)),     # weight stays resident
            pl.BlockSpec((d_out, 1), lambda i: (0, 0)),        # bias stays resident
        ],
        out_specs=pl.BlockSpec((d_out, tb), lambda i: (0, i)),
        compiler_params=pltpu.CompilerParams(
            # Independent batch tiles -> shard across TCs on v7x; harmless elsewhere.
            dimension_semantics=("parallel",),
            # Headroom for 2048-4096 row tiles; stays under v7x's 64 MiB physical VMEM.
            vmem_limit_bytes=28 * 1024 * 1024,
        ),
        cost_estimate=pl.CostEstimate(
            flops=2 * B * d_in * d_out,
            transcendentals=0,
            bytes_accessed=(B * d_in + B * d_out + d_in * d_out) * x.dtype.itemsize,
        ),
    )(x, w_t, b2d)

    # Tiny layout-plumbing transpose back to the PyTorch-facing (B, 8) shape.
    return out_t.T


if __name__ == "__main__":
    key = jax.random.PRNGKey(0)
    k_x, k_w, k_b, k_x2 = jax.random.split(key, 4)

    # Deterministic PyTorch-style init: U(-1/sqrt(fan_in), 1/sqrt(fan_in))
    bound = 1.0 / jnp.sqrt(jnp.float32(D_IN))
    w_fc2 = jax.random.uniform(k_w, (D_OUT, D_IN), jnp.float32, -bound, bound)
    b_fc2 = jax.random.uniform(k_b, (D_OUT,), jnp.float32, -bound, bound)

    # Case 1: small batch -> single full-extent tile path.
    x_small = jax.random.normal(k_x, (8, D_IN), jnp.float32)
    out_small = jax.block_until_ready(mlp_module_forward(x_small, w_fc2, b_fc2))
    ref_small = x_small @ w_fc2.T + b_fc2
    assert out_small.shape == (8, D_OUT)
    assert jnp.allclose(out_small, ref_small, atol=1e-4, rtol=1e-4)

    # Case 2: moderate batch -> multi-step lane-dense path (2 grid steps,
    # partial last tile exercises output clipping).
    x_big = jax.random.normal(k_x2, (300, D_IN), jnp.float32)
    out_big = jax.block_until_ready(mlp_module_forward(x_big, w_fc2, b_fc2))
    ref_big = x_big @ w_fc2.T + b_fc2
    assert out_big.shape == (300, D_OUT)
    assert jnp.allclose(out_big, ref_big, atol=1e-4, rtol=1e-4)

    print("KERNEL_OK")
</pallas_src>

<mosaic_0001>
module attributes {stable_mosaic.version = 11 : i64} {
  func.func @_fc2_kernel(%arg0: i32, %arg1: memref<8x512xf32, #tpu.memory_space<vmem>>, %arg2: memref<512x8xf32, #tpu.memory_space<vmem>>, %arg3: memref<8x1xf32, #tpu.memory_space<vmem>>, %arg4: memref<8x8xf32, #tpu.memory_space<vmem>>) attributes {dimension_semantics = [#tpu.dimension_semantics<parallel>], iteration_bounds = array<i64: 1>, scalar_prefetch = 0 : i64, scratch_operands = 0 : i64, tpu.core_type = #tpu.core_type<tc>, window_params = [{transform_indices = @transform_0, window_bounds = array<i64: 8, 512>}, {pipeline_mode = #tpu.pipeline_mode<synchronous>, transform_indices = @transform_1, window_bounds = array<i64: 512, 8>}, {pipeline_mode = #tpu.pipeline_mode<synchronous>, transform_indices = @transform_2, window_bounds = array<i64: 8, 1>}, {transform_indices = @transform_3, window_bounds = array<i64: 8, 8>}]} {
    %c0 = arith.constant 0 : index
    %c0_0 = arith.constant 0 : index
    %0 = vector.load %arg1[%c0, %c0_0] : memref<8x512xf32, #tpu.memory_space<vmem>>, vector<8x512xf32>
    %c0_1 = arith.constant 0 : index
    %c0_2 = arith.constant 0 : index
    %1 = vector.load %arg2[%c0_1, %c0_2] : memref<512x8xf32, #tpu.memory_space<vmem>>, vector<512x8xf32>
    %cst = arith.constant dense<0.000000e+00> : vector<8x8xf32>
    %2 = tpu.matmul %0, %1, %cst {dimension_numbers = #tpu.dot_dimension_numbers<[1], [0], [0], [1], [0, 0, 1, 1], [], []>} : vector<8x512xf32>, vector<512x8xf32>, vector<8x8xf32> -> vector<8x8xf32>
    %3 = tpu.transpose %2, [1, 0] : vector<8x8xf32> -> vector<8x8xf32>
    %c0_3 = arith.constant 0 : index
    %c0_4 = arith.constant 0 : index
    %4 = vector.load %arg3[%c0_3, %c0_4] : memref<8x1xf32, #tpu.memory_space<vmem>>, vector<8x1xf32>
    %5 = vector.broadcast %4 : vector<8x1xf32> to vector<8x8xf32>
    %6 = arith.addf %3, %5 : vector<8x8xf32>
    %c0_5 = arith.constant 0 : index
    %c0_6 = arith.constant 0 : index
    %7 = vector.load %arg4[%c0_5, %c0_6] : memref<8x8xf32, #tpu.memory_space<vmem>>, vector<8x8xf32>
    tpu.vector_store %arg4[%c0_5, %c0_6], %6 {strides = array<i32>} : memref<8x8xf32, #tpu.memory_space<vmem>>, vector<8x8xf32>,
    return
  }
  func.func @transform_0(%arg0: i32) -> (i32, i32) {
    %c0_i32 = arith.constant 0 : i32
    %c0_i32_0 = arith.constant 0 : i32
    return %arg0, %c0_i32 : i32, i32
  }
  func.func @transform_1(%arg0: i32) -> (i32, i32) {
    %c0_i32 = arith.constant 0 : i32
    %c0_i32_0 = arith.constant 0 : i32
    %c0_i32_1 = arith.constant 0 : i32
    return %c0_i32, %c0_i32_0 : i32, i32
  }
  func.func @transform_2(%arg0: i32) -> (i32, i32) {
    %c0_i32 = arith.constant 0 : i32
    %c0_i32_0 = arith.constant 0 : i32
    %c0_i32_1 = arith.constant 0 : i32
    return %c0_i32, %c0_i32_0 : i32, i32
  }
  func.func @transform_3(%arg0: i32) -> (i32, i32) {
    %c0_i32 = arith.constant 0 : i32
    %c0_i32_0 = arith.constant 0 : i32
    return %c0_i32, %arg0 : i32, i32
  }
}

</mosaic_0001>

<llo_original>
// kernel: tpu_custom_call.1
$region0: #{tpu_custom_call.1}
  #allocation0 [shape = 'u32[]', space=smem, size = 0x4, offset = 0x4, fixed_abs, tag = 'smem constant byte address 0x4 - core index']
  #allocation1 [shape = 'u32[144,128]{1,0:T(1,128)}', space=vmem, size = 0x12000, scoped, tag = 'internal scratch']
  %s0 = inlined_call_operand.vmem [shape: f32[8,512], index: 0, kind: input, shape index: {}]
  %s1 = inlined_call_operand.vmem [shape: f32[512,8], index: 1, kind: input, shape index: {}]
  %s2 = inlined_call_operand.vmem [shape: f32[8,1], index: 2, kind: input, shape index: {}]
  %s3 = inlined_call_operand.hbm [shape: f32[8,8], index: 3, kind: output, shape index: {}]
  %s4 = sld [smem:[#allocation0]]
  $region22: #{tpu_custom_call.1} parent=0
    _
  %s6 = ssub.s32 1, %s4
  %s7 = scalar_select 0, %s6, %s4
  $region1: #{tpu_custom_call.1} parent=0
    #allocation2 [shape = 'u8[4096]{0}', space=vmem, size = 0x1000, scoped, tag = 'output window, operand 0, single buffered']
    #allocation3 [shape = 's32[1]{0}', space=sflag, size = 0x4, scoped, tag = 'scoped memory for tpu_custom_call.1']
    %8 = vsyncpa [#allocation3], 0
    // Predicated region
    $region2: #{tpu_custom_call.1} parent=1 // pred_check
      _
    $region3: #{tpu_custom_call.1} parent=1 // pred_check_branch
      %10 = sbr.rel (0) target = $region5
    $region4: #{tpu_custom_call.1} parent=1 // pred_region
      _
    $region5: #{tpu_custom_call.1} parent=1 // pred_fallthru
      _
    // Predicated region
    $region6: #{tpu_custom_call.1} parent=1 // pred_check
      _
    $region7: #{tpu_custom_call.1} parent=1 // pred_check_branch
      %12 = sbr.rel (0) target = $region9
    $region8: #{tpu_custom_call.1} parent=1 // pred_region
      _
    $region9: #{tpu_custom_call.1} parent=1 // pred_fallthru
      _
    // Predicated region
    $region10: #{tpu_custom_call.1} parent=1 // pred_check
      _
    $region11: #{tpu_custom_call.1} parent=1 // pred_check_branch
      %14 = sbr.rel (0) target = $region13
    $region12: #{tpu_custom_call.1} parent=1 // pred_region
      _
    $region13: #{tpu_custom_call.1} parent=1 // pred_fallthru
      _
    %v15 = vld [vmem:[%s0] sm:$0xff]
    %v16 = vld [vmem:[%s0 + $0x8] sm:$0xff]
    %v17 = vld [vmem:[%s0 + $0x10] sm:$0xff]
    %v18 = vld [vmem:[%s0 + $0x18] sm:$0xff]
    %v19 = vld [vmem:[%s1] sm:$0xff]
    %v20 = vld [vmem:[%s1 + $0x8] sm:$0xff]
    %v21 = vld [vmem:[%s1 + $0x10] sm:$0xff]
    %v22 = vld [vmem:[%s1 + $0x18] sm:$0xff]
    %v23 = vld [vmem:[%s1 + $0x20] sm:$0xff]
    %v24 = vld [vmem:[%s1 + $0x28] sm:$0xff]
    %v25 = vld [vmem:[%s1 + $0x30] sm:$0xff]
    %v26 = vld [vmem:[%s1 + $0x38] sm:$0xff]
    %v27 = vld [vmem:[%s1 + $0x40] sm:$0xff]
    %v28 = vld [vmem:[%s1 + $0x48] sm:$0xff]
    %v29 = vld [vmem:[%s1 + $0x50] sm:$0xff]
    %v30 = vld [vmem:[%s1 + $0x58] sm:$0xff]
    %v31 = vld [vmem:[%s1 + $0x60] sm:$0xff]
    %v32 = vld [vmem:[%s1 + $0x68] sm:$0xff]
    %v33 = vld [vmem:[%s1 + $0x70] sm:$0xff]
    %v34 = vld [vmem:[%s1 + $0x78] sm:$0xff]
    %v35 = vld [vmem:[%s1 + $0x80] sm:$0xff]
    %v36 = vld [vmem:[%s1 + $0x88] sm:$0xff]
    %v37 = vld [vmem:[%s1 + $0x90] sm:$0xff]
    %v38 = vld [vmem:[%s1 + $0x98] sm:$0xff]
    %v39 = vld [vmem:[%s1 + $0xa0] sm:$0xff]
    %v40 = vld [vmem:[%s1 + $0xa8] sm:$0xff]
    %v41 = vld [vmem:[%s1 + $0xb0] sm:$0xff]
    %v42 = vld [vmem:[%s1 + $0xb8] sm:$0xff]
    %v43 = vld [vmem:[%s1 + $0xc0] sm:$0xff]
    %v44 = vld [vmem:[%s1 + $0xc8] sm:$0xff]
    %v45 = vld [vmem:[%s1 + $0xd0] sm:$0xff]
    %v46 = vld [vmem:[%s1 + $0xd8] sm:$0xff]
    %v47 = vld [vmem:[%s1 + $0xe0] sm:$0xff]
    %v48 = vld [vmem:[%s1 + $0xe8] sm:$0xff]
    %v49 = vld [vmem:[%s1 + $0xf0] sm:$0xff]
    %v50 = vld [vmem:[%s1 + $0xf8] sm:$0xff]
    %v51 = vld [vmem:[%s1 + $0x100] sm:$0xff]
    %v52 = vld [vmem:[%s1 + $0x108] sm:$0xff]
    %v53 = vld [vmem:[%s1 + $0x110] sm:$0xff]
    %v54 = vld [vmem:[%s1 + $0x118] sm:$0xff]
    %v55 = vld [vmem:[%s1 + $0x120] sm:$0xff]
    %v56 = vld [vmem:[%s1 + $0x128] sm:$0xff]
    %v57 = vld [vmem:[%s1 + $0x130] sm:$0xff]
    %v58 = vld [vmem:[%s1 + $0x138] sm:$0xff]
    %v59 = vld [vmem:[%s1 + $0x140] sm:$0xff]
    %v60 = vld [vmem:[%s1 + $0x148] sm:$0xff]
    %v61 = vld [vmem:[%s1 + $0x150] sm:$0xff]
    %v62 = vld [vmem:[%s1 + $0x158] sm:$0xff]
    %v63 = vld [vmem:[%s1 + $0x160] sm:$0xff]
    %v64 = vld [vmem:[%s1 + $0x168] sm:$0xff]
    %v65 = vld [vmem:[%s1 + $0x170] sm:$0xff]
    %v66 = vld [vmem:[%s1 + $0x178] sm:$0xff]
    %v67 = vld [vmem:[%s1 + $0x180] sm:$0xff]
    %v68 = vld [vmem:[%s1 + $0x188] sm:$0xff]
    %v69 = vld [vmem:[%s1 + $0x190] sm:$0xff]
    %v70 = vld [vmem:[%s1 + $0x198] sm:$0xff]
    %v71 = vld [vmem:[%s1 + $0x1a0] sm:$0xff]
    %v72 = vld [vmem:[%s1 + $0x1a8] sm:$0xff]
    %v73 = vld [vmem:[%s1 + $0x1b0] sm:$0xff]
    %v74 = vld [vmem:[%s1 + $0x1b8] sm:$0xff]
    %v75 = vld [vmem:[%s1 + $0x1c0] sm:$0xff]
    %v76 = vld [vmem:[%s1 + $0x1c8] sm:$0xff]
    %v77 = vld [vmem:[%s1 + $0x1d0] sm:$0xff]
    %v78 = vld [vmem:[%s1 + $0x1d8] sm:$0xff]
    %v79 = vld [vmem:[%s1 + $0x1e0] sm:$0xff]
    %v80 = vld [vmem:[%s1 + $0x1e8] sm:$0xff]
    %v81 = vld [vmem:[%s1 + $0x1f0] sm:$0xff]
    %v82 = vld [vmem:[%s1 + $0x1f8] sm:$0xff]
    %83 = vmatprep.subr.mxu0 0.0
    %84 = vmatpush1.msra.mxu0 %v19
    %85 = vmatprep.subr.mxu0 0.0
    %86 = vmatpush1.msra.mxu0 %v20
    %87 = vmatprep.subr.mxu0 0.0
    %88 = vmatpush1.msra.mxu0 %v21
    %89 = vmatprep.subr.mxu0 0.0
    %90 = vmatpush1.msra.mxu0 %v22
    %91 = vmatprep.subr.mxu0 0.0
    %92 = vmatpush1.msra.mxu0 %v23
    %93 = vmatprep.subr.mxu0 0.0
    %94 = vmatpush1.msra.mxu0 %v24
    %95 = vmatprep.subr.mxu0 0.0
    %96 = vmatpush1.msra.mxu0 %v25
    %97 = vmatprep.subr.mxu0 0.0
    %98 = vmatpush1.msra.mxu0 %v26
    %99 = vmatprep.subr.mxu0 0.0
    %100 = vmatpush1.msra.mxu0 %v27
    %101 = vmatprep.subr.mxu0 0.0
    %102 = vmatpush1.msra.mxu0 %v28
    %103 = vmatprep.subr.mxu0 0.0
    %104 = vmatpush1.msra.mxu0 %v29
    %105 = vmatprep.subr.mxu0 0.0
    %106 = vmatpush1.msra.mxu0 %v30
    %107 = vmatprep.subr.mxu0 0.0
    %108 = vmatpush1.msra.mxu0 %v31
    %109 = vmatprep.subr.mxu0 0.0
    %110 = vmatpush1.msra.mxu0 %v32
    %111 = vmatprep.subr.mxu0 0.0
    %112 = vmatpush1.msra.mxu0 %v33
    %113 = vmatprep.subr.mxu0 0.0
    %114 = vmatpush1.msra.mxu0 %v34
    %115 = vmatprep.subr.mxu0 0.0
    %116 = vmatpush1.msra.mxu0 %v35
    %117 = vmatprep.subr.mxu0 0.0
    %118 = vmatpush1.msra.mxu0 %v36
    %119 = vmatprep.subr.mxu0 0.0
    %120 = vmatpush1.msra.mxu0 %v37
    %121 = vmatprep.subr.mxu0 0.0
    %122 = vmatpush1.msra.mxu0 %v38
    %123 = vmatprep.subr.mxu0 0.0
    %124 = vmatpush1.msra.mxu0 %v39
    %125 = vmatprep.subr.mxu0 0.0
    %126 = vmatpush1.msra.mxu0 %v40
    %127 = vmatprep.subr.mxu0 0.0
    %128 = vmatpush1.msra.mxu0 %v41
    %129 = vmatprep.subr.mxu0 0.0
    %130 = vmatpush1.msra.mxu0 %v42
    %131 = vmatprep.subr.mxu0 0.0
    %132 = vmatpush1.msra.mxu0 %v43
    %133 = vmatprep.subr.mxu0 0.0
    %134 = vmatpush1.msra.mxu0 %v44
    %135 = vmatprep.subr.mxu0 0.0
    %136 = vmatpush1.msra.mxu0 %v45
    %137 = vmatprep.subr.mxu0 0.0
    %138 = vmatpush1.msra.mxu0 %v46
    %139 = vmatprep.subr.mxu0 0.0
    %140 = vmatpush1.msra.mxu0 %v47
    %141 = vmatprep.subr.mxu0 0.0
    %142 = vmatpush1.msra.mxu0 %v48
    %143 = vmatprep.subr.mxu0 0.0
    %144 = vmatpush1.msra.mxu0 %v49
    %145 = vmatprep.subr.mxu0 0.0
    %146 = vmatpush1.msra.mxu0 %v50
    %147 = vmatprep.mubr.f32.mxu0 %v16
    %148 = vmatmul.mubr.f32.gmra.mrb[0].mxu0 %v15
    %v149 = vpop.f32.mrb[0].mxu0
    %v150 = vadd.f32 0.0, %v149
    %v151 = vpop.f32.mrb[0].mxu0
    %152 = vdwg.mxu0
    %153 = vmatprep.subr.mxu0 0.0
    %154 = vmatpush1.msra.mxu0 %v51
    %155 = vmatprep.subr.mxu0 0.0
    %156 = vmatpush1.msra.mxu0 %v52
    %157 = vmatprep.subr.mxu0 0.0
    %158 = vmatpush1.msra.mxu0 %v53
    %159 = vmatprep.subr.mxu0 0.0
    %160 = vmatpush1.msra.mxu0 %v54
    %161 = vmatprep.subr.mxu0 0.0
    %162 = vmatpush1.msra.mxu0 %v55
    %163 = vmatprep.subr.mxu0 0.0
    %164 = vmatpush1.msra.mxu0 %v56
    %165 = vmatprep.subr.mxu0 0.0
    %166 = vmatpush1.msra.mxu0 %v57
    %167 = vmatprep.subr.mxu0 0.0
    %168 = vmatpush1.msra.mxu0 %v58
    %169 = vmatprep.subr.mxu0 0.0
    %170 = vmatpush1.msra.mxu0 %v59
    %171 = vmatprep.subr.mxu0 0.0
    %172 = vmatpush1.msra.mxu0 %v60
    %173 = vmatprep.subr.mxu0 0.0
    %174 = vmatpush1.msra.mxu0 %v61
    %175 = vmatprep.subr.mxu0 0.0
    %176 = vmatpush1.msra.mxu0 %v62
    %177 = vmatprep.subr.mxu0 0.0
    %178 = vmatpush1.msra.mxu0 %v63
    %179 = vmatprep.subr.mxu0 0.0
    %180 = vmatpush1.msra.mxu0 %v64
    %181 = vmatprep.subr.mxu0 0.0
    %182 = vmatpush1.msra.mxu0 %v65
    %183 = vmatprep.subr.mxu0 0.0
    %184 = vmatpush1.msra.mxu0 %v66
    %185 = vmatprep.subr.mxu0 0.0
    %186 = vmatpush1.msra.mxu0 %v67
    %187 = vmatprep.subr.mxu0 0.0
    %188 = vmatpush1.msra.mxu0 %v68
    %189 = vmatprep.subr.mxu0 0.0
    %190 = vmatpush1.msra.mxu0 %v69
    %191 = vmatprep.subr.mxu0 0.0
    %192 = vmatpush1.msra.mxu0 %v70
    %193 = vmatprep.subr.mxu0 0.0
    %194 = vmatpush1.msra.mxu0 %v71
    %195 = vmatprep.subr.mxu0 0.0
    %196 = vmatpush1.msra.mxu0 %v72
    %197 = vmatprep.subr.mxu0 0.0
    %198 = vmatpush1.msra.mxu0 %v73
    %199 = vmatprep.subr.mxu0 0.0
    %200 = vmatpush1.msra.mxu0 %v74
    %201 = vmatprep.subr.mxu0 0.0
    %202 = vmatpush1.msra.mxu0 %v75
    %203 = vmatprep.subr.mxu0 0.0
    %204 = vmatpush1.msra.mxu0 %v76
    %205 = vmatprep.subr.mxu0 0.0
    %206 = vmatpush1.msra.mxu0 %v77
    %207 = vmatprep.subr.mxu0 0.0
    %208 = vmatpush1.msra.mxu0 %v78
    %209 = vmatprep.subr.mxu0 0.0
    %210 = vmatpush1.msra.mxu0 %v79
    %211 = vmatprep.subr.mxu0 0.0
    %212 = vmatpush1.msra.mxu0 %v80
    %213 = vmatprep.subr.mxu0 0.0
    %214 = vmatpush1.msra.mxu0 %v81
    %215 = vmatprep.subr.mxu0 0.0
    %216 = vmatpush1.msra.mxu0 %v82
    %217 = vmatprep.mubr.f32.mxu0 %v18
    %218 = vmatmul.mubr.f32.gmra.mrb[0].mxu0 %v17
    %v219 = vpop.f32.mrb[0].mxu0
    %v220 = vadd.f32 %v150, %v219
    %v221 = vpop.f32.mrb[0].mxu0
    %222 = vdwg.mxu0
    %223 = vxpose.xlu0.b32.start [1/16] %v220, 128
    %224 = vxpose.xlu0.b32.cont [2/16] 0.0, 128
    %225 = vxpose.xlu0.b32.cont [3/16] 0.0, 128
    %226 = vxpose.xlu0.b32.cont [4/16] 0.0, 128
    %227 = vxpose.xlu0.b32.cont [5/16] 0.0, 128
    %228 = vxpose.xlu0.b32.cont [6/16] 0.0, 128
    %229 = vxpose.xlu0.b32.cont [7/16] 0.0, 128
    %230 = vxpose.xlu0.b32.cont [8/16] 0.0, 128
    %231 = vxpose.xlu0.b32.cont [9/16] 0.0, 128
    %232 = vxpose.xlu0.b32.cont [10/16] 0.0, 128
    %233 = vxpose.xlu0.b32.cont [11/16] 0.0, 128
    %234 = vxpose.xlu0.b32.cont [12/16] 0.0, 128
    %235 = vxpose.xlu0.b32.cont [13/16] 0.0, 128
    %236 = vxpose.xlu0.b32.cont [14/16] 0.0, 128
    %237 = vxpose.xlu0.b32.cont [15/16] 0.0, 128
    %238 = vxpose.xlu0.b32.end [16/16] 0.0, 128
    %v239 = vpop.trf.xlu0
    %v240 = vpop.trf.xlu0
    %v241 = vpop.trf.xlu0
    %v242 = vpop.trf.xlu0
    %v243 = vpop.trf.xlu0
    %v244 = vpop.trf.xlu0
    %v245 = vpop.trf.xlu0
    %v246 = vpop.trf.xlu0
    %v247 = vpop.trf.xlu0
    %v248 = vpop.trf.xlu0
    %v249 = vpop.trf.xlu0
    %v250 = vpop.trf.xlu0
    %v251 = vpop.trf.xlu0
    %v252 = vpop.trf.xlu0
    %v253 = vpop.trf.xlu0
    %v254 = vpop.trf.xlu0
    %v255 = vld [vmem:[%s2] sm:$0xff]
    %257 = vset.pattern.permute.xlu0 0
    %258 = vperm.xlu0 %257, %v255
    %v259 = vpop.permute.xlu0 %258
    %v261 = vadd.f32 %v239, %v259
    %vm262 = vcmask 64512
    %263 = vst.msk [vmem:[#allocation2] sm:$0xff] %vm262, %v261
    // Predicated region
    $region14: #{tpu_custom_call.1} parent=1 // pred_check
      _
    $region15: #{tpu_custom_call.1} parent=1 // pred_check_branch
      %265 = sbr.rel (0) target = $region17
    $region16: #{tpu_custom_call.1} parent=1 // pred_region
      %s267 = ssub.s32 128, 128
      %268 = vsyncadd [#allocation3], %s267
      %s270 = sshll.u32 [#allocation2], 4
      %s271 = int_to_ptr.vmem [resolvable:$true] %s270
      %273 = dma.vmem_to_hbm [thread:$0]  %s271, 128, %s3, [#allocation3]
    $region17: #{tpu_custom_call.1} parent=1 // pred_fallthru
      _
    // Predicated region
    $region18: #{tpu_custom_call.1} parent=1 // pred_check
      _
    $region19: #{tpu_custom_call.1} parent=1 // pred_check_branch
      %275 = sbr.rel (0) target = $region21
    $region20: #{tpu_custom_call.1} parent=1 // pred_region
      %276 = dma.done [#allocation3], 128
    $region21: #{tpu_custom_call.1} parent=1 // pred_fallthru
      _
    %277 = vsyncpa [#allocation3], 1

</llo_original>
